<compile_context>
chip_gen: v6e
topology: v6e:2x2x1
jax: 0.10.0
libtpu: 0.0.40
codegen_flags: <defaults>
</compile_context>

<pallas_src>
import functools

import jax
import jax.numpy as jnp
from jax.experimental import pallas as pl
from jax.experimental.pallas import tpu as pltpu

LANE_PAD = 128  # lane width of the packed-weight slab / bias tile / output


def mlp6_kernel(x_ref, w1_ref, wpk_ref, bias_ref, o_ref, *, dims, row_offsets):
    """Fused 5-layer MLP.  dims = per-layer output widths (64,32,5,16,C);
    row_offsets = static row offsets of W2..W5 inside the packed bf16 slab."""
    # Cast the f32 input tile to bf16 once; every matmul runs bf16 x bf16 on
    # the MXU with f32 accumulation.
    h = x_ref[...].astype(jnp.bfloat16)

    # Layer 1: the big (prod, 64) bf16 weight, kept as its own operand.
    h = jnp.dot(h, w1_ref[...], preferred_element_type=jnp.float32)
    h = jnp.maximum(h + bias_ref[0:1, 0:dims[0]], 0.0)

    # Layers 2..5: static slices of the packed bf16 slab.
    for li in range(1, 5):
        r = row_offsets[li - 1]
        k = dims[li - 1]              # input width of this layer
        last = li == 4
        # Last layer uses all 128 zero-padded output lanes -> lane-dense store.
        w = wpk_ref[r:r + k, :] if last else wpk_ref[r:r + k, 0:dims[li]]
        b = bias_ref[li:li + 1, 0:w.shape[1]]
        h = jnp.dot(h.astype(jnp.bfloat16), w,
                    preferred_element_type=jnp.float32) + b
        if not last:
            h = jnp.maximum(h, 0.0)

    o_ref[...] = h


def custom_mlp6_forward(x_flat, w1_bf16, w_slab_bf16, bias_pack_f32,
                        dims, row_offsets, *, batch_tile=512):
    """x_flat: (B, prod) f32.  Returns (B, num_classes) f32 logits."""
    B, K = x_flat.shape
    num_classes = int(dims[-1])
    out_pad = int(bias_pack_f32.shape[1])          # 128 (lane-dense output)

    kernel = functools.partial(mlp6_kernel, dims=tuple(int(d) for d in dims),
                               row_offsets=tuple(int(r) for r in row_offsets))
    args = (x_flat, w1_bf16, w_slab_bf16, bias_pack_f32)
    out_shape = jax.ShapeDtypeStruct((B, out_pad), jnp.float32)

    if B <= batch_tile:
        # Tiny-batch / latency path: one grid point, everything resident.
        out = pl.pallas_call(
            kernel,
            out_shape=out_shape,
            in_specs=[pl.BlockSpec(memory_space=pltpu.VMEM) for _ in args],
            out_specs=pl.BlockSpec(memory_space=pltpu.VMEM),
        )(*args)
        return out[:, :num_classes]

    # Batched path: stream x / out over a 1-D "parallel" grid (double-buffered
    # by BlockSpec pipelining); weights + bias are fetched once and stay
    # resident (constant index_map).  On v7x keep the grid length a multiple
    # of 2 so both TensorCores get work.
    tm = batch_tile
    grid = (pl.cdiv(B, tm),)

    def const_spec(shape):
        return pl.BlockSpec(shape, lambda i: (0, 0))
    # TODO(synk): pipeline_mode=pl.Buffered(1) on the resident weight specs
    # would halve their (already tiny, ~0.33 MiB) VMEM footprint; omitted for
    # maximum portability across jax versions.

    in_specs = ([pl.BlockSpec((tm, K), lambda i: (i, 0))]
                + [const_spec(w1_bf16.shape),
                   const_spec(w_slab_bf16.shape),
                   const_spec(bias_pack_f32.shape)])
    out_specs = pl.BlockSpec((tm, out_pad), lambda i: (i, 0))

    # Rough double-buffered VMEM estimate; raise the scoped limit only if it
    # exceeds v5e's 16 MiB default, capped below v7x's 64 MiB physical VMEM.
    weight_bytes = (w1_bf16.size * 2 + w_slab_bf16.size * 2
                    + bias_pack_f32.size * 4)
    est = 2 * (tm * K * 4 + tm * out_pad * 4) + 2 * weight_bytes + (2 << 20)
    cp_kwargs = dict(dimension_semantics=("parallel",))
    if est > 16 * 1024 * 1024:
        cp_kwargs["vmem_limit_bytes"] = int(min(est, 48 * 1024 * 1024))

    out = pl.pallas_call(
        kernel,
        out_shape=out_shape,
        grid=grid,
        in_specs=in_specs,
        out_specs=out_specs,
        compiler_params=pltpu.CompilerParams(**cp_kwargs),
    )(*args)
    return out[:, :num_classes]


def init_params(key, prod_size, num_classes=10):
    """Same Linear shapes as the PyTorch module (f32 master copies); weights
    stored (in_features, out_features) so y = x @ W + b."""
    shapes = [(prod_size, 64), (64, 32), (32, 5), (5, 16), (16, num_classes)]
    weights, biases = [], []
    for i, (fan_in, fan_out) in enumerate(shapes):
        kw, kb = jax.random.split(jax.random.fold_in(key, i))
        bound = 1.0 / jnp.sqrt(fan_in)
        weights.append(jax.random.uniform(kw, (fan_in, fan_out), jnp.float32,
                                          -bound, bound))
        biases.append(jax.random.uniform(kb, (fan_out,), jnp.float32,
                                         -bound, bound))
    return weights, biases


def pack_params(weights_f32, biases_f32):
    """bf16 W1, one (rows,128) bf16 slab holding W2..W5 at 16-aligned row
    offsets (W5 zero-padded to 128 output lanes), and one (8,128) f32 bias
    tile with one bias per sublane row at lane offset 0."""
    w1 = weights_f32[0].astype(jnp.bfloat16)

    row_offsets, off = [], 0
    for w in weights_f32[1:]:
        row_offsets.append(off)
        off += ((int(w.shape[0]) + 15) // 16) * 16   # keep bf16 sublane tiles aligned
    total_rows = ((off + 15) // 16) * 16
    slab = jnp.zeros((total_rows, LANE_PAD), jnp.bfloat16)
    for w, r in zip(weights_f32[1:], row_offsets):
        slab = slab.at[r:r + int(w.shape[0]), :int(w.shape[1])].set(
            w.astype(jnp.bfloat16))

    bias = jnp.zeros((8, LANE_PAD), jnp.float32)
    for i, b in enumerate(biases_f32):
        bias = bias.at[i, :int(b.shape[0])].set(b.astype(jnp.float32))

    return w1, slab, bias, tuple(row_offsets)


def reference_forward(x_flat, weights_bf16, biases_f32):
    """Pure-JAX reference with the same numerics as the kernel: bf16 operands
    into each matmul, f32 accumulation, f32 bias / ReLU."""
    h = x_flat.astype(jnp.bfloat16)
    n = len(weights_bf16)
    for i, (w, b) in enumerate(zip(weights_bf16, biases_f32)):
        h = jnp.dot(h, w, preferred_element_type=jnp.float32) + b
        if i < n - 1:
            h = jnp.maximum(h, 0.0).astype(jnp.bfloat16)
    return h


if __name__ == "__main__":
    key = jax.random.PRNGKey(0)
    img_size = (4, 16, 16)          # (C, H, W)
    batch = 2
    num_classes = 10
    prod_size = 4 * 16 * 16         # 1024

    kx, kp = jax.random.split(key)
    x = jax.random.normal(kx, (batch,) + img_size, dtype=jnp.float32)  # NCHW
    weights_f32, biases_f32 = init_params(kp, prod_size, num_classes)
    w1_bf16, w_slab, bias_pack, row_offsets = pack_params(weights_f32, biases_f32)
    dims = tuple(int(w.shape[1]) for w in weights_f32)   # (64, 32, 5, 16, 10)
    weights_bf16 = [w.astype(jnp.bfloat16) for w in weights_f32]

    x_flat = x.reshape(batch, prod_size)   # matches torch x.view(-1, prod)

    # Small-batch (single-block) path.
    out = custom_mlp6_forward(x_flat, w1_bf16, w_slab, bias_pack,
                              dims, row_offsets)
    out = jax.block_until_ready(out)
    ref = reference_forward(x_flat, weights_bf16, biases_f32)
    assert out.shape == (batch, num_classes)
    assert jnp.allclose(out, ref, atol=1e-2, rtol=1e-2), "small-batch mismatch"

    # Batched-grid path: weights resident in VMEM, x/out streamed over an even
    # number of grid steps (2048 / 512 = 4) so v7x can use both TensorCores.
    xb = jax.random.normal(jax.random.fold_in(key, 123), (2048, prod_size),
                           dtype=jnp.float32)
    out_b = custom_mlp6_forward(xb, w1_bf16, w_slab, bias_pack,
                                dims, row_offsets, batch_tile=512)
    out_b = jax.block_until_ready(out_b)
    ref_b = reference_forward(xb, weights_bf16, biases_f32)
    assert out_b.shape == (2048, num_classes)
    assert jnp.allclose(out_b, ref_b, atol=1e-2, rtol=1e-2), "batched mismatch"

    print("KERNEL_OK")
</pallas_src>

<mosaic_0001>
module attributes {stable_mosaic.version = 11 : i64} {
  func.func @mlp6_kernel(%arg0: memref<2x1024xf32, #tpu.memory_space<vmem>>, %arg1: memref<1024x64xbf16, #tpu.memory_space<vmem>>, %arg2: memref<128x128xbf16, #tpu.memory_space<vmem>>, %arg3: memref<8x128xf32, #tpu.memory_space<vmem>>, %arg4: memref<2x128xf32, #tpu.memory_space<vmem>>) attributes {dimension_semantics = [], scalar_prefetch = 0 : i64, scratch_operands = 0 : i64, tpu.core_type = #tpu.core_type<tc>} {
    %c0 = arith.constant 0 : index
    %c0_0 = arith.constant 0 : index
    %0 = vector.load %arg0[%c0, %c0_0] : memref<2x1024xf32, #tpu.memory_space<vmem>>, vector<2x1024xf32>
    %1 = arith.truncf %0 : vector<2x1024xf32> to vector<2x1024xbf16>
    %c0_1 = arith.constant 0 : index
    %c0_2 = arith.constant 0 : index
    %2 = vector.load %arg1[%c0_1, %c0_2] : memref<1024x64xbf16, #tpu.memory_space<vmem>>, vector<1024x64xbf16>
    %cst = arith.constant dense<0.000000e+00> : vector<2x64xf32>
    %3 = tpu.matmul %1, %2, %cst {dimension_numbers = #tpu.dot_dimension_numbers<[1], [0], [0], [1], [0, 0, 1, 1], [], []>} : vector<2x1024xbf16>, vector<1024x64xbf16>, vector<2x64xf32> -> vector<2x64xf32>
    %c0_3 = arith.constant 0 : index
    %c0_4 = arith.constant 0 : index
    %4 = vector.load %arg3[%c0_3, %c0_4] : memref<8x128xf32, #tpu.memory_space<vmem>>, vector<1x64xf32>
    %5 = vector.broadcast %4 : vector<1x64xf32> to vector<2x64xf32>
    %6 = arith.addf %3, %5 : vector<2x64xf32>
    %cst_5 = arith.constant 0.000000e+00 : f32
    %7 = vector.broadcast %cst_5 : f32 to vector<2x64xf32>
    %8 = arith.maximumf %6, %7 : vector<2x64xf32>
    %c0_6 = arith.constant 0 : index
    %c0_7 = arith.constant 0 : index
    %9 = vector.load %arg2[%c0_6, %c0_7] : memref<128x128xbf16, #tpu.memory_space<vmem>>, vector<64x32xbf16>
    %c1 = arith.constant 1 : index
    %c0_8 = arith.constant 0 : index
    %10 = vector.load %arg3[%c1, %c0_8] : memref<8x128xf32, #tpu.memory_space<vmem>>, vector<1x32xf32>
    %11 = arith.truncf %8 : vector<2x64xf32> to vector<2x64xbf16>
    %cst_9 = arith.constant dense<0.000000e+00> : vector<2x32xf32>
    %12 = tpu.matmul %11, %9, %cst_9 {dimension_numbers = #tpu.dot_dimension_numbers<[1], [0], [0], [1], [0, 0, 1, 1], [], []>} : vector<2x64xbf16>, vector<64x32xbf16>, vector<2x32xf32> -> vector<2x32xf32>
    %13 = vector.broadcast %10 : vector<1x32xf32> to vector<2x32xf32>
    %14 = arith.addf %12, %13 : vector<2x32xf32>
    %cst_10 = arith.constant 0.000000e+00 : f32
    %15 = vector.broadcast %cst_10 : f32 to vector<2x32xf32>
    %16 = arith.maximumf %14, %15 : vector<2x32xf32>
    %c64 = arith.constant 64 : index
    %c0_11 = arith.constant 0 : index
    %17 = vector.load %arg2[%c64, %c0_11] : memref<128x128xbf16, #tpu.memory_space<vmem>>, vector<32x5xbf16>
    %c2 = arith.constant 2 : index
    %c0_12 = arith.constant 0 : index
    %18 = vector.load %arg3[%c2, %c0_12] : memref<8x128xf32, #tpu.memory_space<vmem>>, vector<1x5xf32>
    %19 = arith.truncf %16 : vector<2x32xf32> to vector<2x32xbf16>
    %cst_13 = arith.constant dense<0.000000e+00> : vector<2x5xf32>
    %20 = tpu.matmul %19, %17, %cst_13 {dimension_numbers = #tpu.dot_dimension_numbers<[1], [0], [0], [1], [0, 0, 1, 1], [], []>} : vector<2x32xbf16>, vector<32x5xbf16>, vector<2x5xf32> -> vector<2x5xf32>
    %21 = vector.broadcast %18 : vector<1x5xf32> to vector<2x5xf32>
    %22 = arith.addf %20, %21 : vector<2x5xf32>
    %cst_14 = arith.constant 0.000000e+00 : f32
    %23 = vector.broadcast %cst_14 : f32 to vector<2x5xf32>
    %24 = arith.maximumf %22, %23 : vector<2x5xf32>
    %c96 = arith.constant 96 : index
    %c0_15 = arith.constant 0 : index
    %25 = vector.load %arg2[%c96, %c0_15] : memref<128x128xbf16, #tpu.memory_space<vmem>>, vector<5x16xbf16>
    %c3 = arith.constant 3 : index
    %c0_16 = arith.constant 0 : index
    %26 = vector.load %arg3[%c3, %c0_16] : memref<8x128xf32, #tpu.memory_space<vmem>>, vector<1x16xf32>
    %27 = arith.truncf %24 : vector<2x5xf32> to vector<2x5xbf16>
    %cst_17 = arith.constant dense<0.000000e+00> : vector<2x16xf32>
    %28 = tpu.matmul %27, %25, %cst_17 {dimension_numbers = #tpu.dot_dimension_numbers<[1], [0], [0], [1], [0, 0, 1, 1], [], []>} : vector<2x5xbf16>, vector<5x16xbf16>, vector<2x16xf32> -> vector<2x16xf32>
    %29 = vector.broadcast %26 : vector<1x16xf32> to vector<2x16xf32>
    %30 = arith.addf %28, %29 : vector<2x16xf32>
    %cst_18 = arith.constant 0.000000e+00 : f32
    %31 = vector.broadcast %cst_18 : f32 to vector<2x16xf32>
    %32 = arith.maximumf %30, %31 : vector<2x16xf32>
    %c112 = arith.constant 112 : index
    %c0_19 = arith.constant 0 : index
    %33 = vector.load %arg2[%c112, %c0_19] : memref<128x128xbf16, #tpu.memory_space<vmem>>, vector<16x128xbf16>
    %c4 = arith.constant 4 : index
    %c0_20 = arith.constant 0 : index
    %34 = vector.load %arg3[%c4, %c0_20] : memref<8x128xf32, #tpu.memory_space<vmem>>, vector<1x128xf32>
    %35 = arith.truncf %32 : vector<2x16xf32> to vector<2x16xbf16>
    %cst_21 = arith.constant dense<0.000000e+00> : vector<2x128xf32>
    %36 = tpu.matmul %35, %33, %cst_21 {dimension_numbers = #tpu.dot_dimension_numbers<[1], [0], [0], [1], [0, 0, 1, 1], [], []>} : vector<2x16xbf16>, vector<16x128xbf16>, vector<2x128xf32> -> vector<2x128xf32>
    %37 = vector.broadcast %34 : vector<1x128xf32> to vector<2x128xf32>
    %38 = arith.addf %36, %37 : vector<2x128xf32>
    %c0_22 = arith.constant 0 : index
    %c0_23 = arith.constant 0 : index
    %39 = vector.load %arg4[%c0_22, %c0_23] : memref<2x128xf32, #tpu.memory_space<vmem>>, vector<2x128xf32>
    tpu.vector_store %arg4[%c0_22, %c0_23], %38 {strides = array<i32>} : memref<2x128xf32, #tpu.memory_space<vmem>>, vector<2x128xf32>,
    return
  }
}

</mosaic_0001>

<llo_original>
// kernel: tpu_custom_call.1
$region0: #{tpu_custom_call.1}
  #allocation0 [shape = 'u32[]', space=smem, size = 0x4, offset = 0x4, fixed_abs, tag = 'smem constant byte address 0x4 - core index']
  #allocation1 [shape = 'u32[144,128]{1,0:T(1,128)}', space=vmem, size = 0x12000, scoped, tag = 'internal scratch']
  %s0 = inlined_call_operand.vmem [shape: f32[2,1024], index: 0, kind: input, shape index: {}]
  %s1 = inlined_call_operand.vmem [shape: bf16[1024,64], index: 1, kind: input, shape index: {}]
  %s2 = inlined_call_operand.vmem [shape: bf16[128,128], index: 2, kind: input, shape index: {}]
  %s3 = inlined_call_operand.vmem [shape: f32[8,128], index: 3, kind: input, shape index: {}]
  %s4 = inlined_call_operand.hbm [shape: f32[2,128], index: 4, kind: output, shape index: {}]
  %s5 = sld [smem:[#allocation0]]
  $region26: #{tpu_custom_call.1} parent=0
    _
  %s7 = ssub.s32 1, %s5
  %s8 = scalar_select 0, %s7, %s5
  $region1: #{tpu_custom_call.1} parent=0
    #allocation2 [shape = 'u8[1024]{0}', space=vmem, size = 0x400, scoped, tag = 'output window, operand 0, single buffered']
    #allocation3 [shape = 's32[1]{0}', space=sflag, size = 0x4, scoped, tag = 'scoped memory for tpu_custom_call.1']
    %9 = vsyncpa [#allocation3], 0
    // Predicated region
    $region2: #{tpu_custom_call.1} parent=1 // pred_check
      _
    $region3: #{tpu_custom_call.1} parent=1 // pred_check_branch
      %11 = sbr.rel (0) target = $region5
    $region4: #{tpu_custom_call.1} parent=1 // pred_region
      _
    $region5: #{tpu_custom_call.1} parent=1 // pred_fallthru
      _
    // Predicated region
    $region6: #{tpu_custom_call.1} parent=1 // pred_check
      _
    $region7: #{tpu_custom_call.1} parent=1 // pred_check_branch
      %13 = sbr.rel (0) target = $region9
    $region8: #{tpu_custom_call.1} parent=1 // pred_region
      _
    $region9: #{tpu_custom_call.1} parent=1 // pred_fallthru
      _
    // Predicated region
    $region10: #{tpu_custom_call.1} parent=1 // pred_check
      _
    $region11: #{tpu_custom_call.1} parent=1 // pred_check_branch
      %15 = sbr.rel (0) target = $region13
    $region12: #{tpu_custom_call.1} parent=1 // pred_region
      _
    $region13: #{tpu_custom_call.1} parent=1 // pred_fallthru
      _
    // Predicated region
    $region14: #{tpu_custom_call.1} parent=1 // pred_check
      _
    $region15: #{tpu_custom_call.1} parent=1 // pred_check_branch
      %17 = sbr.rel (0) target = $region17
    $region16: #{tpu_custom_call.1} parent=1 // pred_region
      _
    $region17: #{tpu_custom_call.1} parent=1 // pred_fallthru
      _
    %v19 = vld [vmem:[%s0] sm:$0xff]
    %v20 = vld [vmem:[%s0 + $0x8] sm:$0xff]
    %v23 = vcombine.high %v19, %v19
    %v25 = vunpack.c.l.s4 1983009808
    %v26 = vunpack.c.0.s8 %v25
    %v27 = vlaneseq
    %v28 = vshrl.u32 %v27, 7
    %v29 = vsub.s32 %v26, %v28
    %v30 = vrot.slane %v19, %v29
    %v32 = vunpack.c.l.s4 1983009808
    %v33 = vunpack.c.0.s8 %v32
    %v34 = vlaneseq
    %v35 = vshrl.u32 %v34, 7
    %v36 = vsub.s32 %v33, %v35
    %v37 = vrot.slane %v23, %v36
    %v38 = vcombine.high %v30, %v30
    %v39 = vcombine.high %v37, %v37
    %v40 = vcombine.high %v20, %v20
    %v42 = vunpack.c.l.s4 1983009808
    %v43 = vunpack.c.0.s8 %v42
    %v44 = vlaneseq
    %v45 = vshrl.u32 %v44, 7
    %v46 = vsub.s32 %v43, %v45
    %v47 = vrot.slane %v20, %v46
    %v49 = vunpack.c.l.s4 1983009808
    %v50 = vunpack.c.0.s8 %v49
    %v51 = vlaneseq
    %v52 = vshrl.u32 %v51, 7
    %v53 = vsub.s32 %v50, %v52
    %v54 = vrot.slane %v40, %v53
    %v55 = vcombine.high %v47, %v47
    %v56 = vcombine.high %v54, %v54
    %v65 = vpack.c.bf16 %v30, %v30
    %v66 = vpack.c.bf16 %v38, %v38
    %v67 = vpack.c.bf16 %v37, %v37
    %v68 = vpack.c.bf16 %v39, %v39
    %v69 = vpack.c.bf16 %v47, %v47
    %v70 = vpack.c.bf16 %v55, %v55
    %v71 = vpack.c.bf16 %v54, %v54
    %v72 = vpack.c.bf16 %v56, %v56
    %v73 = vld [vmem:[%s1] sm:$0xf]
    %v74 = vld [vmem:[%s1 + $0x4] sm:$0xf]
    %v75 = vld [vmem:[%s1 + $0x8] sm:$0xf]
    %v76 = vld [vmem:[%s1 + $0xc] sm:$0xf]
    %v77 = vld [vmem:[%s1 + $0x10] sm:$0xf]
    %v78 = vld [vmem:[%s1 + $0x14] sm:$0xf]
    %v79 = vld [vmem:[%s1 + $0x18] sm:$0xf]
    %v80 = vld [vmem:[%s1 + $0x1c] sm:$0xf]
    %v81 = vld [vmem:[%s1 + $0x20] sm:$0xf]
    %v82 = vld [vmem:[%s1 + $0x24] sm:$0xf]
    %v83 = vld [vmem:[%s1 + $0x28] sm:$0xf]
    %v84 = vld [vmem:[%s1 + $0x2c] sm:$0xf]
    %v85 = vld [vmem:[%s1 + $0x30] sm:$0xf]
    %v86 = vld [vmem:[%s1 + $0x34] sm:$0xf]
    %v87 = vld [vmem:[%s1 + $0x38] sm:$0xf]
    %v88 = vld [vmem:[%s1 + $0x3c] sm:$0xf]
    %v89 = vld [vmem:[%s1 + $0x40] sm:$0xf]
    %v90 = vld [vmem:[%s1 + $0x44] sm:$0xf]
    %v91 = vld [vmem:[%s1 + $0x48] sm:$0xf]
    %v92 = vld [vmem:[%s1 + $0x4c] sm:$0xf]
    %v93 = vld [vmem:[%s1 + $0x50] sm:$0xf]
    %v94 = vld [vmem:[%s1 + $0x54] sm:$0xf]
    %v95 = vld [vmem:[%s1 + $0x58] sm:$0xf]
    %v96 = vld [vmem:[%s1 + $0x5c] sm:$0xf]
    %v97 = vld [vmem:[%s1 + $0x60] sm:$0xf]
    %v98 = vld [vmem:[%s1 + $0x64] sm:$0xf]
    %v99 = vld [vmem:[%s1 + $0x68] sm:$0xf]
    %v100 = vld [vmem:[%s1 + $0x6c] sm:$0xf]
    %v101 = vld [vmem:[%s1 + $0x70] sm:$0xf]
    %v102 = vld [vmem:[%s1 + $0x74] sm:$0xf]
    %v103 = vld [vmem:[%s1 + $0x78] sm:$0xf]
    %v104 = vld [vmem:[%s1 + $0x7c] sm:$0xf]
    %v105 = vld [vmem:[%s1 + $0x80] sm:$0xf]
    %v106 = vld [vmem:[%s1 + $0x84] sm:$0xf]
    %v107 = vld [vmem:[%s1 + $0x88] sm:$0xf]
    %v108 = vld [vmem:[%s1 + $0x8c] sm:$0xf]
    %v109 = vld [vmem:[%s1 + $0x90] sm:$0xf]
    %v110 = vld [vmem:[%s1 + $0x94] sm:$0xf]
    %v111 = vld [vmem:[%s1 + $0x98] sm:$0xf]
    %v112 = vld [vmem:[%s1 + $0x9c] sm:$0xf]
    %v113 = vld [vmem:[%s1 + $0xa0] sm:$0xf]
    %v114 = vld [vmem:[%s1 + $0xa4] sm:$0xf]
    %v115 = vld [vmem:[%s1 + $0xa8] sm:$0xf]
    %v116 = vld [vmem:[%s1 + $0xac] sm:$0xf]
    %v117 = vld [vmem:[%s1 + $0xb0] sm:$0xf]
    %v118 = vld [vmem:[%s1 + $0xb4] sm:$0xf]
    %v119 = vld [vmem:[%s1 + $0xb8] sm:$0xf]
    %v120 = vld [vmem:[%s1 + $0xbc] sm:$0xf]
    %v121 = vld [vmem:[%s1 + $0xc0] sm:$0xf]
    %v122 = vld [vmem:[%s1 + $0xc4] sm:$0xf]
    %v123 = vld [vmem:[%s1 + $0xc8] sm:$0xf]
    %v124 = vld [vmem:[%s1 + $0xcc] sm:$0xf]
    %v125 = vld [vmem:[%s1 + $0xd0] sm:$0xf]
    %v126 = vld [vmem:[%s1 + $0xd4] sm:$0xf]
    %v127 = vld [vmem:[%s1 + $0xd8] sm:$0xf]
    %v128 = vld [vmem:[%s1 + $0xdc] sm:$0xf]
    %v129 = vld [vmem:[%s1 + $0xe0] sm:$0xf]
    %v130 = vld [vmem:[%s1 + $0xe4] sm:$0xf]
    %v131 = vld [vmem:[%s1 + $0xe8] sm:$0xf]
    %v132 = vld [vmem:[%s1 + $0xec] sm:$0xf]
    %v133 = vld [vmem:[%s1 + $0xf0] sm:$0xf]
    %v134 = vld [vmem:[%s1 + $0xf4] sm:$0xf]
    %v135 = vld [vmem:[%s1 + $0xf8] sm:$0xf]
    %v136 = vld [vmem:[%s1 + $0xfc] sm:$0xf]
    %v137 = vld [vmem:[%s1 + $0x100] sm:$0xf]
    %v138 = vld [vmem:[%s1 + $0x104] sm:$0xf]
    %v139 = vld [vmem:[%s1 + $0x108] sm:$0xf]
    %v140 = vld [vmem:[%s1 + $0x10c] sm:$0xf]
    %v141 = vld [vmem:[%s1 + $0x110] sm:$0xf]
    %v142 = vld [vmem:[%s1 + $0x114] sm:$0xf]
    %v143 = vld [vmem:[%s1 + $0x118] sm:$0xf]
    %v144 = vld [vmem:[%s1 + $0x11c] sm:$0xf]
    %v145 = vld [vmem:[%s1 + $0x120] sm:$0xf]
    %v146 = vld [vmem:[%s1 + $0x124] sm:$0xf]
    %v147 = vld [vmem:[%s1 + $0x128] sm:$0xf]
    %v148 = vld [vmem:[%s1 + $0x12c] sm:$0xf]
    %v149 = vld [vmem:[%s1 + $0x130] sm:$0xf]
    %v150 = vld [vmem:[%s1 + $0x134] sm:$0xf]
    %v151 = vld [vmem:[%s1 + $0x138] sm:$0xf]
    %v152 = vld [vmem:[%s1 + $0x13c] sm:$0xf]
    %v153 = vld [vmem:[%s1 + $0x140] sm:$0xf]
    %v154 = vld [vmem:[%s1 + $0x144] sm:$0xf]
    %v155 = vld [vmem:[%s1 + $0x148] sm:$0xf]
    %v156 = vld [vmem:[%s1 + $0x14c] sm:$0xf]
    %v157 = vld [vmem:[%s1 + $0x150] sm:$0xf]
    %v158 = vld [vmem:[%s1 + $0x154] sm:$0xf]
    %v159 = vld [vmem:[%s1 + $0x158] sm:$0xf]
    %v160 = vld [vmem:[%s1 + $0x15c] sm:$0xf]
    %v161 = vld [vmem:[%s1 + $0x160] sm:$0xf]
    %v162 = vld [vmem:[%s1 + $0x164] sm:$0xf]
    %v163 = vld [vmem:[%s1 + $0x168] sm:$0xf]
    %v164 = vld [vmem:[%s1 + $0x16c] sm:$0xf]
    %v165 = vld [vmem:[%s1 + $0x170] sm:$0xf]
    %v166 = vld [vmem:[%s1 + $0x174] sm:$0xf]
    %v167 = vld [vmem:[%s1 + $0x178] sm:$0xf]
    %v168 = vld [vmem:[%s1 + $0x17c] sm:$0xf]
    %v169 = vld [vmem:[%s1 + $0x180] sm:$0xf]
    %v170 = vld [vmem:[%s1 + $0x184] sm:$0xf]
    %v171 = vld [vmem:[%s1 + $0x188] sm:$0xf]
    %v172 = vld [vmem:[%s1 + $0x18c] sm:$0xf]
    %v173 = vld [vmem:[%s1 + $0x190] sm:$0xf]
    %v174 = vld [vmem:[%s1 + $0x194] sm:$0xf]
    %v175 = vld [vmem:[%s1 + $0x198] sm:$0xf]
    %v176 = vld [vmem:[%s1 + $0x19c] sm:$0xf]
    %v177 = vld [vmem:[%s1 + $0x1a0] sm:$0xf]
    %v178 = vld [vmem:[%s1 + $0x1a4] sm:$0xf]
    %v179 = vld [vmem:[%s1 + $0x1a8] sm:$0xf]
    %v180 = vld [vmem:[%s1 + $0x1ac] sm:$0xf]
    %v181 = vld [vmem:[%s1 + $0x1b0] sm:$0xf]
    %v182 = vld [vmem:[%s1 + $0x1b4] sm:$0xf]
    %v183 = vld [vmem:[%s1 + $0x1b8] sm:$0xf]
    %v184 = vld [vmem:[%s1 + $0x1bc] sm:$0xf]
    %v185 = vld [vmem:[%s1 + $0x1c0] sm:$0xf]
    %v186 = vld [vmem:[%s1 + $0x1c4] sm:$0xf]
    %v187 = vld [vmem:[%s1 + $0x1c8] sm:$0xf]
    %v188 = vld [vmem:[%s1 + $0x1cc] sm:$0xf]
    %v189 = vld [vmem:[%s1 + $0x1d0] sm:$0xf]
    %v190 = vld [vmem:[%s1 + $0x1d4] sm:$0xf]
    %v191 = vld [vmem:[%s1 + $0x1d8] sm:$0xf]
    %v192 = vld [vmem:[%s1 + $0x1dc] sm:$0xf]
    %v193 = vld [vmem:[%s1 + $0x1e0] sm:$0xf]
    %v194 = vld [vmem:[%s1 + $0x1e4] sm:$0xf]
    %v195 = vld [vmem:[%s1 + $0x1e8] sm:$0xf]
    %v196 = vld [vmem:[%s1 + $0x1ec] sm:$0xf]
    %v197 = vld [vmem:[%s1 + $0x1f0] sm:$0xf]
    %v198 = vld [vmem:[%s1 + $0x1f4] sm:$0xf]
    %v199 = vld [vmem:[%s1 + $0x1f8] sm:$0xf]
    %v200 = vld [vmem:[%s1 + $0x1fc] sm:$0xf]
    %v201 = vld [vmem:[%s3] sm:$0x1]
    %v202 = vlaneseq
    %v203 = vshrl.u32 %v202, 7
    %v204 = vsub.s32 0, %v203
    %v205 = vrot.slane %v201, %v204
    %v334 = vunpack.c.l.b16 %v73
    %v335 = vunpack.c.l.b16 %v74
    %v336 = vunpack.c.l.b16 %v75
    %v337 = vunpack.c.l.b16 %v76
    %v338 = vunpack.c.l.b16 %v77
    %v339 = vunpack.c.l.b16 %v78
    %v340 = vunpack.c.l.b16 %v79
    %v341 = vunpack.c.l.b16 %v80
    %v342 = vunpack.c.l.b16 %v81
    %v343 = vunpack.c.l.b16 %v82
    %v344 = vunpack.c.l.b16 %v83
    %v345 = vunpack.c.l.b16 %v84
    %v346 = vunpack.c.l.b16 %v85
    %v347 = vunpack.c.l.b16 %v86
    %v348 = vunpack.c.l.b16 %v87
    %v349 = vunpack.c.l.b16 %v88
    %v350 = vunpack.c.l.b16 %v89
    %v351 = vunpack.c.l.b16 %v90
    %v352 = vunpack.c.l.b16 %v91
    %v353 = vunpack.c.l.b16 %v92
    %v354 = vunpack.c.l.b16 %v93
    %v355 = vunpack.c.l.b16 %v94
    %v356 = vunpack.c.l.b16 %v95
    %v357 = vunpack.c.l.b16 %v96
    %v358 = vunpack.c.l.b16 %v97
    %v359 = vunpack.c.l.b16 %v98
    %v360 = vunpack.c.l.b16 %v99
    %v361 = vunpack.c.l.b16 %v100
    %v362 = vunpack.c.l.b16 %v101
    %v363 = vunpack.c.l.b16 %v102
    %v364 = vunpack.c.l.b16 %v103
    %v365 = vunpack.c.l.b16 %v104
    %v366 = vunpack.c.l.b16 %v105
    %v367 = vunpack.c.l.b16 %v106
    %v368 = vunpack.c.l.b16 %v107
    %v369 = vunpack.c.l.b16 %v108
    %v370 = vunpack.c.l.b16 %v109
    %v371 = vunpack.c.l.b16 %v110
    %v372 = vunpack.c.l.b16 %v111
    %v373 = vunpack.c.l.b16 %v112
    %v374 = vunpack.c.l.b16 %v113
    %v375 = vunpack.c.l.b16 %v114
    %v376 = vunpack.c.l.b16 %v115
    %v377 = vunpack.c.l.b16 %v116
    %v378 = vunpack.c.l.b16 %v117
    %v379 = vunpack.c.l.b16 %v118
    %v380 = vunpack.c.l.b16 %v119
    %v381 = vunpack.c.l.b16 %v120
    %v382 = vunpack.c.l.b16 %v121
    %v383 = vunpack.c.l.b16 %v122
    %v384 = vunpack.c.l.b16 %v123
    %v385 = vunpack.c.l.b16 %v124
    %v386 = vunpack.c.l.b16 %v125
    %v387 = vunpack.c.l.b16 %v126
    %v388 = vunpack.c.l.b16 %v127
    %v389 = vunpack.c.l.b16 %v128
    %v390 = vunpack.c.l.b16 %v129
    %v391 = vunpack.c.l.b16 %v130
    %v392 = vunpack.c.l.b16 %v131
    %v393 = vunpack.c.l.b16 %v132
    %v394 = vunpack.c.l.b16 %v133
    %v395 = vunpack.c.l.b16 %v134
    %v396 = vunpack.c.l.b16 %v135
    %v397 = vunpack.c.l.b16 %v136
    %v398 = vunpack.c.l.b16 %v137
    %v399 = vunpack.c.l.b16 %v138
    %v400 = vunpack.c.l.b16 %v139
    %v401 = vunpack.c.l.b16 %v140
    %v402 = vunpack.c.l.b16 %v141
    %v403 = vunpack.c.l.b16 %v142
    %v404 = vunpack.c.l.b16 %v143
    %v405 = vunpack.c.l.b16 %v144
    %v406 = vunpack.c.l.b16 %v145
    %v407 = vunpack.c.l.b16 %v146
    %v408 = vunpack.c.l.b16 %v147
    %v409 = vunpack.c.l.b16 %v148
    %v410 = vunpack.c.l.b16 %v149
    %v411 = vunpack.c.l.b16 %v150
    %v412 = vunpack.c.l.b16 %v151
    %v413 = vunpack.c.l.b16 %v152
    %v414 = vunpack.c.l.b16 %v153
    %v415 = vunpack.c.l.b16 %v154
    %v416 = vunpack.c.l.b16 %v155
    %v417 = vunpack.c.l.b16 %v156
    %v418 = vunpack.c.l.b16 %v157
    %v419 = vunpack.c.l.b16 %v158
    %v420 = vunpack.c.l.b16 %v159
    %v421 = vunpack.c.l.b16 %v160
    %v422 = vunpack.c.l.b16 %v161
    %v423 = vunpack.c.l.b16 %v162
    %v424 = vunpack.c.l.b16 %v163
    %v425 = vunpack.c.l.b16 %v164
    %v426 = vunpack.c.l.b16 %v165
    %v427 = vunpack.c.l.b16 %v166
    %v428 = vunpack.c.l.b16 %v167
    %v429 = vunpack.c.l.b16 %v168
    %v430 = vunpack.c.l.b16 %v169
    %v431 = vunpack.c.l.b16 %v170
    %v432 = vunpack.c.l.b16 %v171
    %v433 = vunpack.c.l.b16 %v172
    %v434 = vunpack.c.l.b16 %v173
    %v435 = vunpack.c.l.b16 %v174
    %v436 = vunpack.c.l.b16 %v175
    %v437 = vunpack.c.l.b16 %v176
    %v438 = vunpack.c.l.b16 %v177
    %v439 = vunpack.c.l.b16 %v178
    %v440 = vunpack.c.l.b16 %v179
    %v441 = vunpack.c.l.b16 %v180
    %v442 = vunpack.c.l.b16 %v181
    %v443 = vunpack.c.l.b16 %v182
    %v444 = vunpack.c.l.b16 %v183
    %v445 = vunpack.c.l.b16 %v184
    %v446 = vunpack.c.l.b16 %v185
    %v447 = vunpack.c.l.b16 %v186
    %v448 = vunpack.c.l.b16 %v187
    %v449 = vunpack.c.l.b16 %v188
    %v450 = vunpack.c.l.b16 %v189
    %v451 = vunpack.c.l.b16 %v190
    %v452 = vunpack.c.l.b16 %v191
    %v453 = vunpack.c.l.b16 %v192
    %v454 = vunpack.c.l.b16 %v193
    %v455 = vunpack.c.l.b16 %v194
    %v456 = vunpack.c.l.b16 %v195
    %v457 = vunpack.c.l.b16 %v196
    %v458 = vunpack.c.l.b16 %v197
    %v459 = vunpack.c.l.b16 %v198
    %v460 = vunpack.c.l.b16 %v199
    %v461 = vunpack.c.l.b16 %v200
    %v462 = vpack.c.b16 %v335, %v334
    %v463 = vpack.c.b16 %v337, %v336
    %v464 = vpack.c.b16 %v339, %v338
    %v465 = vpack.c.b16 %v341, %v340
    %v466 = vpack.c.b16 %v343, %v342
    %v467 = vpack.c.b16 %v345, %v344
    %v468 = vpack.c.b16 %v347, %v346
    %v469 = vpack.c.b16 %v349, %v348
    %v470 = vpack.c.b16 %v351, %v350
    %v471 = vpack.c.b16 %v353, %v352
    %v472 = vpack.c.b16 %v355, %v354
    %v473 = vpack.c.b16 %v357, %v356
    %v474 = vpack.c.b16 %v359, %v358
    %v475 = vpack.c.b16 %v361, %v360
    %v476 = vpack.c.b16 %v363, %v362
    %v477 = vpack.c.b16 %v365, %v364
    %v478 = vpack.c.b16 %v367, %v366
    %v479 = vpack.c.b16 %v369, %v368
    %v480 = vpack.c.b16 %v371, %v370
    %v481 = vpack.c.b16 %v373, %v372
    %v482 = vpack.c.b16 %v375, %v374
    %v483 = vpack.c.b16 %v377, %v376
    %v484 = vpack.c.b16 %v379, %v378
    %v485 = vpack.c.b16 %v381, %v380
    %v486 = vpack.c.b16 %v383, %v382
    %v487 = vpack.c.b16 %v385, %v384
    %v488 = vpack.c.b16 %v387, %v386
    %v489 = vpack.c.b16 %v389, %v388
    %v490 = vpack.c.b16 %v391, %v390
    %v491 = vpack.c.b16 %v393, %v392
    %v492 = vpack.c.b16 %v395, %v394
    %v493 = vpack.c.b16 %v397, %v396
    %v494 = vpack.c.b16 %v399, %v398
    %v495 = vpack.c.b16 %v401, %v400
    %v496 = vpack.c.b16 %v403, %v402
    %v497 = vpack.c.b16 %v405, %v404
    %v498 = vpack.c.b16 %v407, %v406
    %v499 = vpack.c.b16 %v409, %v408
    %v500 = vpack.c.b16 %v411, %v410
    %v501 = vpack.c.b16 %v413, %v412
    %v502 = vpack.c.b16 %v415, %v414
    %v503 = vpack.c.b16 %v417, %v416
    %v504 = vpack.c.b16 %v419, %v418
    %v505 = vpack.c.b16 %v421, %v420
    %v506 = vpack.c.b16 %v423, %v422
    %v507 = vpack.c.b16 %v425, %v424
    %v508 = vpack.c.b16 %v427, %v426
    %v509 = vpack.c.b16 %v429, %v428
    %v510 = vpack.c.b16 %v431, %v430
    %v511 = vpack.c.b16 %v433, %v432
    %v512 = vpack.c.b16 %v435, %v434
    %v513 = vpack.c.b16 %v437, %v436
    %v514 = vpack.c.b16 %v439, %v438
    %v515 = vpack.c.b16 %v441, %v440
    %v516 = vpack.c.b16 %v443, %v442
    %v517 = vpack.c.b16 %v445, %v444
    %v518 = vpack.c.b16 %v447, %v446
    %v519 = vpack.c.b16 %v449, %v448
    %v520 = vpack.c.b16 %v451, %v450
    %v521 = vpack.c.b16 %v453, %v452
    %v522 = vpack.c.b16 %v455, %v454
    %v523 = vpack.c.b16 %v457, %v456
    %v524 = vpack.c.b16 %v459, %v458
    %v525 = vpack.c.b16 %v461, %v460
    %590 = vmatprep.subr.bf16.mxu0 0
    %591 = vmatpush1.bf16.msra.mxu0 %v469
    %592 = vmatprep.subr.bf16.mxu0 0
    %593 = vmatpush1.bf16.msra.mxu0 %v468
    %594 = vmatprep.subr.bf16.mxu0 0
    %595 = vmatpush1.bf16.msra.mxu0 %v467
    %596 = vmatprep.subr.bf16.mxu0 0
    %597 = vmatpush1.bf16.msra.mxu0 %v466
    %598 = vmatprep.subr.bf16.mxu0 0
    %599 = vmatpush1.bf16.msra.mxu0 %v465
    %600 = vmatprep.subr.bf16.mxu0 0
    %601 = vmatpush1.bf16.msra.mxu0 %v464
    %602 = vmatprep.subr.bf16.mxu0 0
    %603 = vmatpush1.bf16.msra.mxu0 %v463
    %604 = vmatprep.subr.bf16.mxu0 0
    %605 = vmatpush1.bf16.msra.mxu0 %v462
    %606 = vmatprep.subr.bf16.mxu0 0
    %607 = vmatpush2.bf16.msra.mxu0 %v477
    %608 = vmatprep.subr.bf16.mxu0 0
    %609 = vmatpush2.bf16.msra.mxu0 %v476
    %610 = vmatprep.subr.bf16.mxu0 0
    %611 = vmatpush2.bf16.msra.mxu0 %v475
    %612 = vmatprep.subr.bf16.mxu0 0
    %613 = vmatpush2.bf16.msra.mxu0 %v474
    %614 = vmatprep.subr.bf16.mxu0 0
    %615 = vmatpush2.bf16.msra.mxu0 %v473
    %616 = vmatprep.subr.bf16.mxu0 0
    %617 = vmatpush2.bf16.msra.mxu0 %v472
    %618 = vmatprep.subr.bf16.mxu0 0
    %619 = vmatpush2.bf16.msra.mxu0 %v471
    %620 = vmatprep.subr.bf16.mxu0 0
    %621 = vmatpush2.bf16.msra.mxu0 %v470
    %622 = vmatprep.mubr.bf16.mxu0 %v66
    %623 = vmatmul.mubr.bf16.gmra.mxu0 %v65
    %v624 = vpop.f32.mrf.mxu0
    %v625 = vadd.f32 %v205, %v624
    %v626 = vpop.f32.mrf.mxu0
    %v627 = vpop.f32.mrf.mxu0
    %v628 = vpop.f32.mrf.mxu0
    %629 = vdwg.mxu0
    %630 = vmatprep.subr.bf16.mxu0 0
    %631 = vmatpush1.bf16.msra.mxu0 %v485
    %632 = vmatprep.subr.bf16.mxu0 0
    %633 = vmatpush1.bf16.msra.mxu0 %v484
    %634 = vmatprep.subr.bf16.mxu0 0
    %635 = vmatpush1.bf16.msra.mxu0 %v483
    %636 = vmatprep.subr.bf16.mxu0 0
    %637 = vmatpush1.bf16.msra.mxu0 %v482
    %638 = vmatprep.subr.bf16.mxu0 0
    %639 = vmatpush1.bf16.msra.mxu0 %v481
    %640 = vmatprep.subr.bf16.mxu0 0
    %641 = vmatpush1.bf16.msra.mxu0 %v480
    %642 = vmatprep.subr.bf16.mxu0 0
    %643 = vmatpush1.bf16.msra.mxu0 %v479
    %644 = vmatprep.subr.bf16.mxu0 0
    %645 = vmatpush1.bf16.msra.mxu0 %v478
    %646 = vmatprep.subr.bf16.mxu0 0
    %647 = vmatpush2.bf16.msra.mxu0 %v493
    %648 = vmatprep.subr.bf16.mxu0 0
    %649 = vmatpush2.bf16.msra.mxu0 %v492
    %650 = vmatprep.subr.bf16.mxu0 0
    %651 = vmatpush2.bf16.msra.mxu0 %v491
    %652 = vmatprep.subr.bf16.mxu0 0
    %653 = vmatpush2.bf16.msra.mxu0 %v490
    %654 = vmatprep.subr.bf16.mxu0 0
    %655 = vmatpush2.bf16.msra.mxu0 %v489
    %656 = vmatprep.subr.bf16.mxu0 0
    %657 = vmatpush2.bf16.msra.mxu0 %v488
    %658 = vmatprep.subr.bf16.mxu0 0
    %659 = vmatpush2.bf16.msra.mxu0 %v487
    %660 = vmatprep.subr.bf16.mxu0 0
    %661 = vmatpush2.bf16.msra.mxu0 %v486
    %662 = vmatprep.mubr.bf16.mxu0 %v68
    %663 = vmatmul.mubr.bf16.gmra.mxu0 %v67
    %v664 = vpop.f32.mrf.mxu0
    %v665 = vadd.f32 %v625, %v664
    %v666 = vpop.f32.mrf.mxu0
    %v667 = vpop.f32.mrf.mxu0
    %v668 = vpop.f32.mrf.mxu0
    %669 = vdwg.mxu0
    %670 = vmatprep.subr.bf16.mxu0 0
    %671 = vmatpush1.bf16.msra.mxu0 %v501
    %672 = vmatprep.subr.bf16.mxu0 0
    %673 = vmatpush1.bf16.msra.mxu0 %v500
    %674 = vmatprep.subr.bf16.mxu0 0
    %675 = vmatpush1.bf16.msra.mxu0 %v499
    %676 = vmatprep.subr.bf16.mxu0 0
    %677 = vmatpush1.bf16.msra.mxu0 %v498
    %678 = vmatprep.subr.bf16.mxu0 0
    %679 = vmatpush1.bf16.msra.mxu0 %v497
    %680 = vmatprep.subr.bf16.mxu0 0
    %681 = vmatpush1.bf16.msra.mxu0 %v496
    %682 = vmatprep.subr.bf16.mxu0 0
    %683 = vmatpush1.bf16.msra.mxu0 %v495
    %684 = vmatprep.subr.bf16.mxu0 0
    %685 = vmatpush1.bf16.msra.mxu0 %v494
    %686 = vmatprep.subr.bf16.mxu0 0
    %687 = vmatpush2.bf16.msra.mxu0 %v509
    %688 = vmatprep.subr.bf16.mxu0 0
    %689 = vmatpush2.bf16.msra.mxu0 %v508
    %690 = vmatprep.subr.bf16.mxu0 0
    %691 = vmatpush2.bf16.msra.mxu0 %v507
    %692 = vmatprep.subr.bf16.mxu0 0
    %693 = vmatpush2.bf16.msra.mxu0 %v506
    %694 = vmatprep.subr.bf16.mxu0 0
    %695 = vmatpush2.bf16.msra.mxu0 %v505
    %696 = vmatprep.subr.bf16.mxu0 0
    %697 = vmatpush2.bf16.msra.mxu0 %v504
    %698 = vmatprep.subr.bf16.mxu0 0
    %699 = vmatpush2.bf16.msra.mxu0 %v503
    %700 = vmatprep.subr.bf16.mxu0 0
    %701 = vmatpush2.bf16.msra.mxu0 %v502
    %702 = vmatprep.mubr.bf16.mxu0 %v70
    %703 = vmatmul.mubr.bf16.gmra.mxu0 %v69
    %v704 = vpop.f32.mrf.mxu0
    %v705 = vadd.f32 %v665, %v704
    %v706 = vpop.f32.mrf.mxu0
    %v707 = vpop.f32.mrf.mxu0
    %v708 = vpop.f32.mrf.mxu0
    %709 = vdwg.mxu0
    %710 = vmatprep.subr.bf16.mxu0 0
    %711 = vmatpush1.bf16.msra.mxu0 %v517
    %712 = vmatprep.subr.bf16.mxu0 0
    %713 = vmatpush1.bf16.msra.mxu0 %v516
    %714 = vmatprep.subr.bf16.mxu0 0
    %715 = vmatpush1.bf16.msra.mxu0 %v515
    %716 = vmatprep.subr.bf16.mxu0 0
    %717 = vmatpush1.bf16.msra.mxu0 %v514
    %718 = vmatprep.subr.bf16.mxu0 0
    %719 = vmatpush1.bf16.msra.mxu0 %v513
    %720 = vmatprep.subr.bf16.mxu0 0
    %721 = vmatpush1.bf16.msra.mxu0 %v512
    %722 = vmatprep.subr.bf16.mxu0 0
    %723 = vmatpush1.bf16.msra.mxu0 %v511
    %724 = vmatprep.subr.bf16.mxu0 0
    %725 = vmatpush1.bf16.msra.mxu0 %v510
    %726 = vmatprep.subr.bf16.mxu0 0
    %727 = vmatpush2.bf16.msra.mxu0 %v525
    %728 = vmatprep.subr.bf16.mxu0 0
    %729 = vmatpush2.bf16.msra.mxu0 %v524
    %730 = vmatprep.subr.bf16.mxu0 0
    %731 = vmatpush2.bf16.msra.mxu0 %v523
    %732 = vmatprep.subr.bf16.mxu0 0
    %733 = vmatpush2.bf16.msra.mxu0 %v522
    %734 = vmatprep.subr.bf16.mxu0 0
    %735 = vmatpush2.bf16.msra.mxu0 %v521
    %736 = vmatprep.subr.bf16.mxu0 0
    %737 = vmatpush2.bf16.msra.mxu0 %v520
    %738 = vmatprep.subr.bf16.mxu0 0
    %739 = vmatpush2.bf16.msra.mxu0 %v519
    %740 = vmatprep.subr.bf16.mxu0 0
    %741 = vmatpush2.bf16.msra.mxu0 %v518
    %742 = vmatprep.mubr.bf16.mxu0 %v72
    %743 = vmatmul.mubr.bf16.gmra.mxu0 %v71
    %v744 = vpop.f32.mrf.mxu0
    %v745 = vadd.f32 %v705, %v744
    %v746 = vpop.f32.mrf.mxu0
    %v747 = vpop.f32.mrf.mxu0
    %v748 = vpop.f32.mrf.mxu0
    %749 = vdwg.mxu0
    %v750 = vmax.f32 %v745, 0.0
    %v751 = vld [vmem:[%s2] sm:$0xf]
    %v752 = vld [vmem:[%s2 + $0x4] sm:$0xf]
    %v753 = vld [vmem:[%s2 + $0x8] sm:$0xf]
    %v754 = vld [vmem:[%s2 + $0xc] sm:$0xf]
    %v755 = vld [vmem:[%s2 + $0x10] sm:$0xf]
    %v756 = vld [vmem:[%s2 + $0x14] sm:$0xf]
    %v757 = vld [vmem:[%s2 + $0x18] sm:$0xf]
    %v758 = vld [vmem:[%s2 + $0x1c] sm:$0xf]
    %v759 = vld [vmem:[%s3 + $0x1] sm:$0x1]
    %v760 = vpack.c.bf16 %v750, %v750
    %v761 = vlaneseq
    %v762 = vshrl.u32 %v761, 7
    %v763 = vsub.s32 0, %v762
    %v764 = vrot.slane %v759, %v763
    %v773 = vunpack.c.l.b16 %v751
    %v774 = vunpack.c.l.b16 %v752
    %v775 = vunpack.c.l.b16 %v753
    %v776 = vunpack.c.l.b16 %v754
    %v777 = vunpack.c.l.b16 %v755
    %v778 = vunpack.c.l.b16 %v756
    %v779 = vunpack.c.l.b16 %v757
    %v780 = vunpack.c.l.b16 %v758
    %v781 = vpack.c.b16 %v774, %v773
    %v782 = vpack.c.b16 %v776, %v775
    %v783 = vpack.c.b16 %v778, %v777
    %v784 = vpack.c.b16 %v780, %v779
    %vm789 = vcmask 523264
    %v791 = vsel %vm789, %v760, 0
    %793 = vmatprep.subr.bf16.mxu0 0
    %794 = vmatpush1.bf16.msra.mxu0 0
    %795 = vmatprep.subr.bf16.mxu0 0
    %796 = vmatpush1.bf16.msra.mxu0 0
    %797 = vmatprep.subr.bf16.mxu0 0
    %798 = vmatpush1.bf16.msra.mxu0 0
    %799 = vmatprep.subr.bf16.mxu0 0
    %800 = vmatpush1.bf16.msra.mxu0 0
    %801 = vmatprep.subr.bf16.mxu0 0
    %802 = vmatpush1.bf16.msra.mxu0 %v784
    %803 = vmatprep.subr.bf16.mxu0 0
    %804 = vmatpush1.bf16.msra.mxu0 %v783
    %805 = vmatprep.subr.bf16.mxu0 0
    %806 = vmatpush1.bf16.msra.mxu0 %v782
    %807 = vmatprep.subr.bf16.mxu0 0
    %808 = vmatpush1.bf16.msra.mxu0 %v781
    %809 = vmatprep.subr.bf16.mxu0 0
    %810 = vmatpush2.bf16.msra.mxu0 0
    %811 = vmatprep.subr.bf16.mxu0 0
    %812 = vmatpush2.bf16.msra.mxu0 0
    %813 = vmatprep.subr.bf16.mxu0 0
    %814 = vmatpush2.bf16.msra.mxu0 0
    %815 = vmatprep.subr.bf16.mxu0 0
    %816 = vmatpush2.bf16.msra.mxu0 0
    %817 = vmatprep.subr.bf16.mxu0 0
    %818 = vmatpush2.bf16.msra.mxu0 0
    %819 = vmatprep.subr.bf16.mxu0 0
    %820 = vmatpush2.bf16.msra.mxu0 0
    %821 = vmatprep.subr.bf16.mxu0 0
    %822 = vmatpush2.bf16.msra.mxu0 0
    %823 = vmatprep.subr.bf16.mxu0 0
    %824 = vmatpush2.bf16.msra.mxu0 0
    %825 = vmatprep.mubr.bf16.mxu0 0
    %826 = vmatmul.mubr.bf16.gmra.mxu0 %v791
    %v827 = vpop.f32.mrf.mxu0
    %v828 = vadd.f32 %v764, %v827
    %v829 = vpop.f32.mrf.mxu0
    %v830 = vpop.f32.mrf.mxu0
    %v831 = vpop.f32.mrf.mxu0
    %832 = vdwg.mxu0
    %v833 = vmax.f32 %v828, 0.0
    %v834 = vld [vmem:[%s2 + $0x20] sm:$0xf]
    %v835 = vld [vmem:[%s2 + $0x24] sm:$0xf]
    %v836 = vld [vmem:[%s2 + $0x28] sm:$0xf]
    %v837 = vld [vmem:[%s2 + $0x2c] sm:$0xf]
    %v838 = vld [vmem:[%s3 + $0x2] sm:$0x1]
    %v839 = vpack.c.bf16 %v833, %v833
    %v840 = vlaneseq
    %v841 = vshrl.u32 %v840, 7
    %v842 = vsub.s32 0, %v841
    %v843 = vrot.slane %v838, %v842
    %v848 = vunpack.c.l.b16 %v834
    %v849 = vunpack.c.l.b16 %v835
    %v850 = vunpack.c.l.b16 %v836
    %v851 = vunpack.c.l.b16 %v837
    %v852 = vpack.c.b16 %v849, %v848
    %v853 = vpack.c.b16 %v851, %v850
    %vm856 = vcmask 261120
    %v858 = vsel %vm856, %v839, 0
    %860 = vmatprep.subr.bf16.mxu0 0
    %861 = vmatpush1.bf16.msra.mxu0 0
    %862 = vmatprep.subr.bf16.mxu0 0
    %863 = vmatpush1.bf16.msra.mxu0 0
    %864 = vmatprep.subr.bf16.mxu0 0
    %865 = vmatpush1.bf16.msra.mxu0 0
    %866 = vmatprep.subr.bf16.mxu0 0
    %867 = vmatpush1.bf16.msra.mxu0 0
    %868 = vmatprep.subr.bf16.mxu0 0
    %869 = vmatpush1.bf16.msra.mxu0 0
    %870 = vmatprep.subr.bf16.mxu0 0
    %871 = vmatpush1.bf16.msra.mxu0 0
    %872 = vmatprep.subr.bf16.mxu0 0
    %873 = vmatpush1.bf16.msra.mxu0 %v853
    %874 = vmatprep.subr.bf16.mxu0 0
    %875 = vmatpush1.bf16.msra.mxu0 %v852
    %876 = vmatprep.subr.bf16.mxu0 0
    %877 = vmatpush2.bf16.msra.mxu0 0
    %878 = vmatprep.subr.bf16.mxu0 0
    %879 = vmatpush2.bf16.msra.mxu0 0
    %880 = vmatprep.subr.bf16.mxu0 0
    %881 = vmatpush2.bf16.msra.mxu0 0
    %882 = vmatprep.subr.bf16.mxu0 0
    %883 = vmatpush2.bf16.msra.mxu0 0
    %884 = vmatprep.subr.bf16.mxu0 0
    %885 = vmatpush2.bf16.msra.mxu0 0
    %886 = vmatprep.subr.bf16.mxu0 0
    %887 = vmatpush2.bf16.msra.mxu0 0
    %888 = vmatprep.subr.bf16.mxu0 0
    %889 = vmatpush2.bf16.msra.mxu0 0
    %890 = vmatprep.subr.bf16.mxu0 0
    %891 = vmatpush2.bf16.msra.mxu0 0
    %892 = vmatprep.mubr.bf16.mxu0 0
    %893 = vmatmul.mubr.bf16.gmra.mxu0 %v858
    %v894 = vpop.f32.mrf.mxu0
    %v895 = vadd.f32 %v843, %v894
    %v896 = vpop.f32.mrf.mxu0
    %v897 = vpop.f32.mrf.mxu0
    %v898 = vpop.f32.mrf.mxu0
    %899 = vdwg.mxu0
    %v900 = vmax.f32 %v895, 0.0
    %v901 = vld [vmem:[%s2 + $0x30] sm:$0x7]
    %v902 = vld [vmem:[%s3 + $0x3] sm:$0x1]
    %v903 = vpack.c.bf16 %v900, %v900
    %v904 = vlaneseq
    %v905 = vshrl.u32 %v904, 7
    %v906 = vsub.s32 0, %v905
    %v907 = vrot.slane %v902, %v906
    %vm908 = vcmask 39936
    %v910 = vsel %vm908, %v903, 0
    %vm912 = vcmask 1041408
    %vm913 = vcmask 1042432
    %v914 = vsel %vm912, 4294967295, 65535
    %v915 = vsel %vm913, %v914, 0
    %v917 = vand.u32 %v901, %v915
    %919 = vmatprep.subr.bf16.mxu0 0
    %920 = vmatpush1.bf16.msra.mxu0 0
    %921 = vmatprep.subr.bf16.mxu0 0
    %922 = vmatpush1.bf16.msra.mxu0 0
    %923 = vmatprep.subr.bf16.mxu0 0
    %924 = vmatpush1.bf16.msra.mxu0 0
    %925 = vmatprep.subr.bf16.mxu0 0
    %926 = vmatpush1.bf16.msra.mxu0 0
    %927 = vmatprep.subr.bf16.mxu0 0
    %928 = vmatpush1.bf16.msra.mxu0 0
    %929 = vmatprep.subr.bf16.mxu0 0
    %930 = vmatpush1.bf16.msra.mxu0 0
    %931 = vmatprep.subr.bf16.mxu0 0
    %932 = vmatpush1.bf16.msra.mxu0 0
    %933 = vmatprep.subr.bf16.mxu0 0
    %934 = vmatpush1.bf16.msra.mxu0 %v917
    %935 = vmatprep.subr.bf16.mxu0 0
    %936 = vmatpush2.bf16.msra.mxu0 0
    %937 = vmatprep.subr.bf16.mxu0 0
    %938 = vmatpush2.bf16.msra.mxu0 0
    %939 = vmatprep.subr.bf16.mxu0 0
    %940 = vmatpush2.bf16.msra.mxu0 0
    %941 = vmatprep.subr.bf16.mxu0 0
    %942 = vmatpush2.bf16.msra.mxu0 0
    %943 = vmatprep.subr.bf16.mxu0 0
    %944 = vmatpush2.bf16.msra.mxu0 0
    %945 = vmatprep.subr.bf16.mxu0 0
    %946 = vmatpush2.bf16.msra.mxu0 0
    %947 = vmatprep.subr.bf16.mxu0 0
    %948 = vmatpush2.bf16.msra.mxu0 0
    %949 = vmatprep.subr.bf16.mxu0 0
    %950 = vmatpush2.bf16.msra.mxu0 0
    %951 = vmatprep.mubr.bf16.mxu0 0
    %952 = vmatmul.mubr.bf16.gmra.mxu0 %v910
    %v953 = vpop.f32.mrf.mxu0
    %v954 = vadd.f32 %v907, %v953
    %v955 = vpop.f32.mrf.mxu0
    %v956 = vpop.f32.mrf.mxu0
    %v957 = vpop.f32.mrf.mxu0
    %958 = vdwg.mxu0
    %v959 = vmax.f32 %v954, 0.0
    %v960 = vld [vmem:[%s2 + $0x38] sm:$0xf]
    %v961 = vld [vmem:[%s2 + $0x3c] sm:$0xf]
    %v962 = vld [vmem:[%s3 + $0x4] sm:$0x1]
    %v963 = vpack.c.bf16 %v959, %v959
    %v964 = vlaneseq
    %v965 = vshrl.u32 %v964, 7
    %v966 = vsub.s32 0, %v965
    %v967 = vrot.slane %v962, %v966
    %v970 = vunpack.c.l.b16 %v960
    %v971 = vunpack.c.l.b16 %v961
    %v972 = vpack.c.b16 %v971, %v970
    %vm974 = vcmask 130048
    %v976 = vsel %vm974, %v963, 0
    %978 = vmatprep.subr.bf16.mxu0 0
    %979 = vmatpush1.bf16.msra.mxu0 0
    %980 = vmatprep.subr.bf16.mxu0 0
    %981 = vmatpush1.bf16.msra.mxu0 0
    %982 = vmatprep.subr.bf16.mxu0 0
    %983 = vmatpush1.bf16.msra.mxu0 0
    %984 = vmatprep.subr.bf16.mxu0 0
    %985 = vmatpush1.bf16.msra.mxu0 0
    %986 = vmatprep.subr.bf16.mxu0 0
    %987 = vmatpush1.bf16.msra.mxu0 0
    %988 = vmatprep.subr.bf16.mxu0 0
    %989 = vmatpush1.bf16.msra.mxu0 0
    %990 = vmatprep.subr.bf16.mxu0 0
    %991 = vmatpush1.bf16.msra.mxu0 0
    %992 = vmatprep.subr.bf16.mxu0 0
    %993 = vmatpush1.bf16.msra.mxu0 %v972
    %994 = vmatprep.subr.bf16.mxu0 0
    %995 = vmatpush2.bf16.msra.mxu0 0
    %996 = vmatprep.subr.bf16.mxu0 0
    %997 = vmatpush2.bf16.msra.mxu0 0
    %998 = vmatprep.subr.bf16.mxu0 0
    %999 = vmatpush2.bf16.msra.mxu0 0
    %1000 = vmatprep.subr.bf16.mxu0 0
    %1001 = vmatpush2.bf16.msra.mxu0 0
    %1002 = vmatprep.subr.bf16.mxu0 0
    %1003 = vmatpush2.bf16.msra.mxu0 0
    %1004 = vmatprep.subr.bf16.mxu0 0
    %1005 = vmatpush2.bf16.msra.mxu0 0
    %1006 = vmatprep.subr.bf16.mxu0 0
    %1007 = vmatpush2.bf16.msra.mxu0 0
    %1008 = vmatprep.subr.bf16.mxu0 0
    %1009 = vmatpush2.bf16.msra.mxu0 0
    %1010 = vmatprep.mubr.bf16.mxu0 0
    %1011 = vmatmul.mubr.bf16.gmra.mxu0 %v976
    %v1012 = vpop.f32.mrf.mxu0
    %v1013 = vadd.f32 %v967, %v1012
    %v1014 = vpop.f32.mrf.mxu0
    %v1015 = vpop.f32.mrf.mxu0
    %v1016 = vpop.f32.mrf.mxu0
    %1017 = vdwg.mxu0
    %1018 = vst [vmem:[#allocation2] sm:$0x3] %v1013
    // Predicated region
    $region18: #{tpu_custom_call.1} parent=1 // pred_check
      _
    $region19: #{tpu_custom_call.1} parent=1 // pred_check_branch
      %1020 = sbr.rel (0) target = $region21
    $region20: #{tpu_custom_call.1} parent=1 // pred_region
      %s1022 = ssub.s32 32, 32
      %1023 = vsyncadd [#allocation3], %s1022
      %s1025 = sshll.u32 [#allocation2], 4
      %s1026 = int_to_ptr.vmem [resolvable:$true] %s1025
      %1028 = dma.vmem_to_hbm [thread:$0]  %s1026, 32, %s4, [#allocation3]
    $region21: #{tpu_custom_call.1} parent=1 // pred_fallthru
      _
    // Predicated region
    $region22: #{tpu_custom_call.1} parent=1 // pred_check
      _
    $region23: #{tpu_custom_call.1} parent=1 // pred_check_branch
      %1030 = sbr.rel (0) target = $region25
    $region24: #{tpu_custom_call.1} parent=1 // pred_region
      %1031 = dma.done [#allocation3], 32
    $region25: #{tpu_custom_call.1} parent=1 // pred_fallthru
      _
    %1032 = vsyncpa [#allocation3], 1

</llo_original>
